<compile_context>
chip_gen: v5e
topology: v5e:2x2
jax: 0.10.0
libtpu: 0.0.40
codegen_flags: <defaults>
</compile_context>

<pallas_src>
import math
import jax
import jax.numpy as jnp
from jax import lax
from jax.experimental import pallas as pl
from jax.experimental.pallas import tpu as pltpu


def _attn_kernel(q_ref, k_ref, v_ref, w_ref, b_ref, o_ref):
    # Block shapes:
    #   q_ref : (NB, TQ, D)   f32
    #   k_ref : (NB, LK, D)   f32
    #   v_ref : (NB, LK, D)   f32
    #   w_ref : (3, D, D)     f32, PyTorch (out, in) layout
    #   b_ref : (3, D)        f32
    #   o_ref : (NB, TQ, D)   f32
    NB, TQ, D = q_ref.shape
    _, LK, _ = k_ref.shape

    # In-kernel bf16 casts (VPU); flatten batch into the M dim so projection
    # matmuls present NB*L rows to the MXU.
    q2 = q_ref[...].astype(jnp.bfloat16).reshape(NB * TQ, D)
    k2 = k_ref[...].astype(jnp.bfloat16).reshape(NB * LK, D)
    v2 = v_ref[...].astype(jnp.bfloat16).reshape(NB * LK, D)
    w = w_ref[...].astype(jnp.bfloat16)          # (3, D, D)
    b = b_ref[...]                               # (3, D) f32

    # x @ W.T with W in PyTorch (out, in) layout == contract dim 1 of both
    # operands (NT matmul, no transpose materialized).
    nt = (((1,), (1,)), ((), ()))
    qp = lax.dot_general(q2, w[0], nt,
                         preferred_element_type=jnp.float32) + b[0:1, :]
    kp = lax.dot_general(k2, w[1], nt,
                         preferred_element_type=jnp.float32) + b[1:2, :]
    vp = lax.dot_general(v2, w[2], nt,
                         preferred_element_type=jnp.float32) + b[2:3, :]

    # Fold the 1/sqrt(D) score scale into the (smaller) q projection, in f32,
    # before the bf16 cast.
    qp = qp * (1.0 / math.sqrt(float(D)))

    qp3 = qp.astype(jnp.bfloat16).reshape(NB, TQ, D)
    kp3 = kp.astype(jnp.bfloat16).reshape(NB, LK, D)
    vp3 = vp.astype(jnp.bfloat16).reshape(NB, LK, D)

    # Scaled scores: contract on the feature dim of both operands (no kp.T).
    s = jnp.einsum("bqd,bkd->bqk", qp3, kp3,
                   preferred_element_type=jnp.float32)        # (NB, TQ, LK)

    # Numerically stable softmax in f32; exact reciprocal on the tiny denom.
    m = jnp.max(s, axis=-1, keepdims=True)
    e = jnp.exp(s - m)
    denom = jnp.sum(e, axis=-1, keepdims=True)
    p = e * pl.reciprocal(denom, approx=False)

    # Dropout == identity (eval mode), then weighted sum of values.
    out = jnp.einsum("bqk,bkd->bqd", p.astype(jnp.bfloat16), vp3,
                     preferred_element_type=jnp.float32)      # (NB, TQ, D)
    o_ref[...] = out.astype(o_ref.dtype)


def attention_model(q, k, v, w_qkv, b_qkv, *, nb=None, tq=None):
    """q: (B, Lq, D); k, v: (B, Lk, D); w_qkv: (3, D, D) PyTorch (out,in); b_qkv: (3, D)."""
    B, Lq, D = q.shape
    _, Lk, _ = k.shape

    # Batch-block size: fuse the whole (small) batch into one step; only block
    # the batch axis when B is large.
    if nb is None:
        if B <= 8:
            nb = B
        else:
            nb = 1
            for cand in (8, 4, 2):
                if B % cand == 0:
                    nb = cand
                    break

    # Query-block size: keep the full Lq unless it is large (splitting a tiny
    # Lq just adds per-step overhead and recomputes the K/V projections).
    if tq is None:
        tq = Lq // 2 if (Lq >= 256 and Lq % 32 == 0) else Lq
    assert B % nb == 0 and Lq % tq == 0

    # No wrapper-side casts: f32 operands straight into the kernel.
    b_f = b_qkv.astype(jnp.float32)          # (3, D)

    grid = (B // nb, Lq // tq)

    return pl.pallas_call(
        _attn_kernel,
        out_shape=jax.ShapeDtypeStruct((B, Lq, D), jnp.float32),
        grid_spec=pltpu.PrefetchScalarGridSpec(
            num_scalar_prefetch=0,
            grid=grid,
            in_specs=[
                pl.BlockSpec((nb, tq, D), lambda b, qi: (b, qi, 0)),   # q
                pl.BlockSpec((nb, Lk, D), lambda b, qi: (b, 0, 0)),    # k
                pl.BlockSpec((nb, Lk, D), lambda b, qi: (b, 0, 0)),    # v
                pl.BlockSpec((3, D, D), lambda b, qi: (0, 0, 0)),      # Wq/Wk/Wv stack
                pl.BlockSpec((3, D), lambda b, qi: (0, 0)),            # bias stack
            ],
            out_specs=pl.BlockSpec((nb, tq, D), lambda b, qi: (b, qi, 0)),
        ),
        compiler_params=pltpu.CompilerParams(
            dimension_semantics=("parallel", "parallel")),
    )(q, k, v, w_qkv, b_f)


def reference(q, k, v, w_qkv, b_qkv):
    qp = jnp.einsum("bld,od->blo", q, w_qkv[0]) + b_qkv[0]
    kp = jnp.einsum("bld,od->blo", k, w_qkv[1]) + b_qkv[1]
    vp = jnp.einsum("bld,od->blo", v, w_qkv[2]) + b_qkv[2]
    s = jnp.einsum("bqd,bkd->bqk", qp, kp) / math.sqrt(q.shape[-1])
    p = jax.nn.softmax(s, axis=-1)
    return jnp.einsum("bqk,bkd->bqd", p, vp)


if __name__ == "__main__":
    # Shapes consistent with the module's globals: q (1,16,128), k/v (1,32,128).
    B, Lq, Lk, D = 1, 16, 32, 128

    key = jax.random.PRNGKey(0)
    ks = jax.random.split(key, 9)
    q = jax.random.normal(ks[0], (B, Lq, D), jnp.float32)
    k = jax.random.normal(ks[1], (B, Lk, D), jnp.float32)
    v = jax.random.normal(ks[2], (B, Lk, D), jnp.float32)

    # Deterministic Linear parameters (PyTorch convention: W (out, in), b (out,)).
    bound = 1.0 / math.sqrt(D)
    wq = jax.random.uniform(ks[3], (D, D), jnp.float32, -bound, bound)
    wk = jax.random.uniform(ks[4], (D, D), jnp.float32, -bound, bound)
    wv = jax.random.uniform(ks[5], (D, D), jnp.float32, -bound, bound)
    bq = jax.random.uniform(ks[6], (D,), jnp.float32, -bound, bound)
    bk = jax.random.uniform(ks[7], (D,), jnp.float32, -bound, bound)
    bv = jax.random.uniform(ks[8], (D,), jnp.float32, -bound, bound)

    w_qkv = jnp.stack([wq, wk, wv])      # (3, D, D), PyTorch (out, in) layout
    b_qkv = jnp.stack([bq, bk, bv])      # (3, D)

    out = attention_model(q, k, v, w_qkv, b_qkv)
    out = jax.block_until_ready(out)

    ref = reference(q, k, v, w_qkv, b_qkv)
    assert out.shape == (B, Lq, D)
    # bf16 matmul operands (f32 accumulation) => looser tolerance than pure f32.
    assert jnp.allclose(out, ref, atol=3e-2, rtol=3e-2), "mismatch vs reference"

    print("KERNEL_OK")
</pallas_src>

<mosaic_0001>
module attributes {stable_mosaic.version = 11 : i64} {
  func.func @_attn_kernel(%arg0: i32, %arg1: i32, %arg2: memref<1x16x128xf32, #tpu.memory_space<vmem>>, %arg3: memref<1x32x128xf32, #tpu.memory_space<vmem>>, %arg4: memref<1x32x128xf32, #tpu.memory_space<vmem>>, %arg5: memref<3x128x128xf32, #tpu.memory_space<vmem>>, %arg6: memref<3x128xf32, #tpu.memory_space<vmem>>, %arg7: memref<1x16x128xf32, #tpu.memory_space<vmem>>) attributes {dimension_semantics = [#tpu.dimension_semantics<parallel>, #tpu.dimension_semantics<parallel>], iteration_bounds = array<i64: 1, 1>, scalar_prefetch = 0 : i64, scratch_operands = 0 : i64, tpu.core_type = #tpu.core_type<tc>, window_params = [{transform_indices = @transform_0, window_bounds = array<i64: 1, 16, 128>}, {transform_indices = @transform_1, window_bounds = array<i64: 1, 32, 128>}, {transform_indices = @transform_2, window_bounds = array<i64: 1, 32, 128>}, {pipeline_mode = #tpu.pipeline_mode<synchronous>, transform_indices = @transform_3, window_bounds = array<i64: 3, 128, 128>}, {pipeline_mode = #tpu.pipeline_mode<synchronous>, transform_indices = @transform_4, window_bounds = array<i64: 3, 128>}, {transform_indices = @transform_5, window_bounds = array<i64: 1, 16, 128>}]} {
    %c0 = arith.constant 0 : index
    %c0_0 = arith.constant 0 : index
    %c0_1 = arith.constant 0 : index
    %0 = vector.load %arg2[%c0, %c0_0, %c0_1] : memref<1x16x128xf32, #tpu.memory_space<vmem>>, vector<1x16x128xf32>
    %1 = arith.truncf %0 : vector<1x16x128xf32> to vector<1x16x128xbf16>
    %2 = vector.shape_cast %1 : vector<1x16x128xbf16> to vector<16x128xbf16>
    %c0_2 = arith.constant 0 : index
    %c0_3 = arith.constant 0 : index
    %c0_4 = arith.constant 0 : index
    %3 = vector.load %arg3[%c0_2, %c0_3, %c0_4] : memref<1x32x128xf32, #tpu.memory_space<vmem>>, vector<1x32x128xf32>
    %4 = arith.truncf %3 : vector<1x32x128xf32> to vector<1x32x128xbf16>
    %5 = vector.shape_cast %4 : vector<1x32x128xbf16> to vector<32x128xbf16>
    %c0_5 = arith.constant 0 : index
    %c0_6 = arith.constant 0 : index
    %c0_7 = arith.constant 0 : index
    %6 = vector.load %arg4[%c0_5, %c0_6, %c0_7] : memref<1x32x128xf32, #tpu.memory_space<vmem>>, vector<1x32x128xf32>
    %7 = arith.truncf %6 : vector<1x32x128xf32> to vector<1x32x128xbf16>
    %8 = vector.shape_cast %7 : vector<1x32x128xbf16> to vector<32x128xbf16>
    %c0_8 = arith.constant 0 : index
    %c0_9 = arith.constant 0 : index
    %c0_10 = arith.constant 0 : index
    %9 = vector.load %arg5[%c0_8, %c0_9, %c0_10] : memref<3x128x128xf32, #tpu.memory_space<vmem>>, vector<3x128x128xf32>
    %10 = arith.truncf %9 : vector<3x128x128xf32> to vector<3x128x128xbf16>
    %c0_11 = arith.constant 0 : index
    %c0_12 = arith.constant 0 : index
    %11 = vector.load %arg6[%c0_11, %c0_12] : memref<3x128xf32, #tpu.memory_space<vmem>>, vector<3x128xf32>
    %12 = vector.extract_strided_slice %10 {offsets = [0, 0, 0], sizes = [1, 128, 128], strides = [1, 1, 1]} : vector<3x128x128xbf16> to vector<1x128x128xbf16>
    %13 = vector.shape_cast %12 : vector<1x128x128xbf16> to vector<128x128xbf16>
    %cst = arith.constant dense<0.000000e+00> : vector<16x128xf32>
    %14 = tpu.matmul %2, %13, %cst {dimension_numbers = #tpu.dot_dimension_numbers<[1], [1], [0], [0], [0, 0, 1, 0], [], []>} : vector<16x128xbf16>, vector<128x128xbf16>, vector<16x128xf32> -> vector<16x128xf32>
    %15 = vector.extract_strided_slice %11 {offsets = [0, 0], sizes = [1, 128], strides = [1, 1]} : vector<3x128xf32> to vector<1x128xf32>
    %16 = vector.broadcast %15 : vector<1x128xf32> to vector<16x128xf32>
    %17 = arith.addf %14, %16 : vector<16x128xf32>
    %18 = vector.extract_strided_slice %10 {offsets = [1, 0, 0], sizes = [1, 128, 128], strides = [1, 1, 1]} : vector<3x128x128xbf16> to vector<1x128x128xbf16>
    %19 = vector.shape_cast %18 : vector<1x128x128xbf16> to vector<128x128xbf16>
    %cst_13 = arith.constant dense<0.000000e+00> : vector<32x128xf32>
    %20 = tpu.matmul %5, %19, %cst_13 {dimension_numbers = #tpu.dot_dimension_numbers<[1], [1], [0], [0], [0, 0, 1, 0], [], []>} : vector<32x128xbf16>, vector<128x128xbf16>, vector<32x128xf32> -> vector<32x128xf32>
    %21 = vector.extract_strided_slice %11 {offsets = [1, 0], sizes = [1, 128], strides = [1, 1]} : vector<3x128xf32> to vector<1x128xf32>
    %22 = vector.broadcast %21 : vector<1x128xf32> to vector<32x128xf32>
    %23 = arith.addf %20, %22 : vector<32x128xf32>
    %24 = vector.extract_strided_slice %10 {offsets = [2, 0, 0], sizes = [1, 128, 128], strides = [1, 1, 1]} : vector<3x128x128xbf16> to vector<1x128x128xbf16>
    %25 = vector.shape_cast %24 : vector<1x128x128xbf16> to vector<128x128xbf16>
    %cst_14 = arith.constant dense<0.000000e+00> : vector<32x128xf32>
    %26 = tpu.matmul %8, %25, %cst_14 {dimension_numbers = #tpu.dot_dimension_numbers<[1], [1], [0], [0], [0, 0, 1, 0], [], []>} : vector<32x128xbf16>, vector<128x128xbf16>, vector<32x128xf32> -> vector<32x128xf32>
    %27 = vector.extract_strided_slice %11 {offsets = [2, 0], sizes = [1, 128], strides = [1, 1]} : vector<3x128xf32> to vector<1x128xf32>
    %28 = vector.broadcast %27 : vector<1x128xf32> to vector<32x128xf32>
    %29 = arith.addf %26, %28 : vector<32x128xf32>
    %cst_15 = arith.constant 0.0883883461 : f32
    %30 = vector.broadcast %cst_15 : f32 to vector<16x128xf32>
    %31 = arith.mulf %17, %30 : vector<16x128xf32>
    %32 = arith.truncf %31 : vector<16x128xf32> to vector<16x128xbf16>
    %33 = vector.shape_cast %32 : vector<16x128xbf16> to vector<1x16x128xbf16>
    %34 = arith.truncf %23 : vector<32x128xf32> to vector<32x128xbf16>
    %35 = vector.shape_cast %34 : vector<32x128xbf16> to vector<1x32x128xbf16>
    %36 = arith.truncf %29 : vector<32x128xf32> to vector<32x128xbf16>
    %37 = vector.shape_cast %36 : vector<32x128xbf16> to vector<1x32x128xbf16>
    "tpu.trace_start"() <{level = 10 : i32, message = "bqd,bkd->bqk"}> : () -> ()
    %cst_16 = arith.constant dense<0.000000e+00> : vector<1x16x32xf32>
    %38 = tpu.matmul %33, %35, %cst_16 {dimension_numbers = #tpu.dot_dimension_numbers<[2], [2], [1], [1], [0, 0, 0, 1, 1, 1], [0], [0]>} : vector<1x16x128xbf16>, vector<1x32x128xbf16>, vector<1x16x32xf32> -> vector<1x16x32xf32>
    "tpu.trace_stop"() : () -> ()
    %cst_17 = arith.constant dense<0xFF800000> : vector<1x16xf32>
    %39 = vector.multi_reduction <maximumf>, %38, %cst_17 [2] : vector<1x16x32xf32> to vector<1x16xf32>
    %40 = vector.shape_cast %39 : vector<1x16xf32> to vector<1x16x1xf32>
    %41 = vector.broadcast %40 : vector<1x16x1xf32> to vector<1x16x32xf32>
    %42 = arith.subf %38, %41 : vector<1x16x32xf32>
    %43 = math.exp %42 : vector<1x16x32xf32>
    %cst_18 = arith.constant dense<0.000000e+00> : vector<1x16xf32>
    %44 = vector.multi_reduction <add>, %43, %cst_18 [2] : vector<1x16x32xf32> to vector<1x16xf32>
    %45 = vector.shape_cast %44 : vector<1x16xf32> to vector<1x16x1xf32>
    %46 = tpu.reciprocal %45 : vector<1x16x1xf32> -> vector<1x16x1xf32>
    %47 = vector.broadcast %46 : vector<1x16x1xf32> to vector<1x16x32xf32>
    %48 = arith.mulf %43, %47 : vector<1x16x32xf32>
    %49 = arith.truncf %48 : vector<1x16x32xf32> to vector<1x16x32xbf16>
    "tpu.trace_start"() <{level = 10 : i32, message = "bqk,bkd->bqd"}> : () -> ()
    %cst_19 = arith.constant dense<0.000000e+00> : vector<1x16x128xf32>
    %50 = tpu.matmul %49, %37, %cst_19 {dimension_numbers = #tpu.dot_dimension_numbers<[2], [1], [1], [2], [0, 0, 0, 1, 1, 2], [0], [0]>} : vector<1x16x32xbf16>, vector<1x32x128xbf16>, vector<1x16x128xf32> -> vector<1x16x128xf32>
    "tpu.trace_stop"() : () -> ()
    %c0_20 = arith.constant 0 : index
    %c0_21 = arith.constant 0 : index
    %c0_22 = arith.constant 0 : index
    %51 = vector.load %arg7[%c0_20, %c0_21, %c0_22] : memref<1x16x128xf32, #tpu.memory_space<vmem>>, vector<1x16x128xf32>
    tpu.vector_store %arg7[%c0_20, %c0_21, %c0_22], %50 {strides = array<i32>} : memref<1x16x128xf32, #tpu.memory_space<vmem>>, vector<1x16x128xf32>,
    return
  }
  func.func @transform_0(%arg0: i32, %arg1: i32) -> (i32, i32, i32) {
    %c0_i32 = arith.constant 0 : i32
    %c0_i32_0 = arith.constant 0 : i32
    return %arg0, %arg1, %c0_i32 : i32, i32, i32
  }
  func.func @transform_1(%arg0: i32, %arg1: i32) -> (i32, i32, i32) {
    %c0_i32 = arith.constant 0 : i32
    %c0_i32_0 = arith.constant 0 : i32
    %c0_i32_1 = arith.constant 0 : i32
    return %arg0, %c0_i32, %c0_i32_0 : i32, i32, i32
  }
  func.func @transform_2(%arg0: i32, %arg1: i32) -> (i32, i32, i32) {
    %c0_i32 = arith.constant 0 : i32
    %c0_i32_0 = arith.constant 0 : i32
    %c0_i32_1 = arith.constant 0 : i32
    return %arg0, %c0_i32, %c0_i32_0 : i32, i32, i32
  }
  func.func @transform_3(%arg0: i32, %arg1: i32) -> (i32, i32, i32) {
    %c0_i32 = arith.constant 0 : i32
    %c0_i32_0 = arith.constant 0 : i32
    %c0_i32_1 = arith.constant 0 : i32
    %c0_i32_2 = arith.constant 0 : i32
    return %c0_i32, %c0_i32_0, %c0_i32_1 : i32, i32, i32
  }
  func.func @transform_4(%arg0: i32, %arg1: i32) -> (i32, i32) {
    %c0_i32 = arith.constant 0 : i32
    %c0_i32_0 = arith.constant 0 : i32
    %c0_i32_1 = arith.constant 0 : i32
    return %c0_i32, %c0_i32_0 : i32, i32
  }
  func.func @transform_5(%arg0: i32, %arg1: i32) -> (i32, i32, i32) {
    %c0_i32 = arith.constant 0 : i32
    %c0_i32_0 = arith.constant 0 : i32
    return %arg0, %arg1, %c0_i32 : i32, i32, i32
  }
}

</mosaic_0001>

<llo_original>
// kernel: tpu_custom_call.1
$region0: #{tpu_custom_call.1}
  #allocation0 [shape = 'u32[]', space=smem, size = 0x4, offset = 0x4, fixed_abs, tag = 'smem constant byte address 0x4 - core index']
  #allocation1 [shape = 'u32[72,128]{1,0:T(1,128)}', space=vmem, size = 0x9000, scoped, tag = 'internal scratch']
  %s0 = inlined_call_operand.hbm [shape: f32[1,16,128], index: 0, kind: input, shape index: {}]
  %s1 = inlined_call_operand.hbm [shape: f32[1,32,128], index: 1, kind: input, shape index: {}]
  %s2 = inlined_call_operand.hbm [shape: f32[1,32,128], index: 2, kind: input, shape index: {}]
  %s3 = inlined_call_operand.hbm [shape: f32[3,128,128], index: 3, kind: input, shape index: {}]
  %s4 = inlined_call_operand.hbm [shape: f32[3,128], index: 4, kind: input, shape index: {}]
  %s5 = inlined_call_operand.hbm [shape: f32[1,16,128], index: 5, kind: output, shape index: {}]
  %s6 = sld [smem:[#allocation0]]
  $region50: #{tpu_custom_call.1} parent=0
    _
  %s8 = ssub.s32 1, %s6
  %s9 = scalar_select 0, %s8, %s6
  $region1: #{tpu_custom_call.1} parent=0
    #allocation2 [shape = 'u8[8192]{0}', space=vmem, size = 0x2000, scoped, tag = 'input window, operand 0, single buffered']
    #allocation3 [shape = 's32[1]{0}', space=sflag, size = 0x4, scoped, tag = 'scoped memory for tpu_custom_call.1']
    #allocation4 [shape = 's32[1]{0}', space=sflag, size = 0x4, scoped, tag = 'scoped memory for tpu_custom_call.1']
    #allocation5 [shape = 'u8[16384]{0}', space=vmem, size = 0x4000, scoped, tag = 'input window, operand 1, single buffered']
    #allocation6 [shape = 's32[1]{0}', space=sflag, size = 0x4, scoped, tag = 'scoped memory for tpu_custom_call.1']
    #allocation7 [shape = 'u8[16384]{0}', space=vmem, size = 0x4000, scoped, tag = 'input window, operand 2, single buffered']
    #allocation8 [shape = 'u8[196608]{0}', space=vmem, size = 0x30000, scoped, tag = 'input window, operand 3, single buffered']
    #allocation9 [shape = 's32[1]{0}', space=sflag, size = 0x4, scoped, tag = 'scoped memory for tpu_custom_call.1']
    #allocation10 [shape = 'u8[2048]{0}', space=vmem, size = 0x800, scoped, tag = 'input window, operand 4, single buffered']
    #allocation11 [shape = 'u8[8192]{0}', space=vmem, size = 0x2000, scoped, tag = 'output window, operand 0, single buffered']
    %10 = vsyncpa [#allocation3], 0
    %11 = vsyncpa [#allocation6], 0
    %12 = vsyncpa [#allocation9], 0
    %13 = vsyncpa [#allocation4], 0
    // Predicated region
    $region2: #{tpu_custom_call.1} parent=1 // pred_check
      _
    $region3: #{tpu_custom_call.1} parent=1 // pred_check_branch
      %15 = sbr.rel (0) target = $region5
    $region4: #{tpu_custom_call.1} parent=1 // pred_region
      %17 = vsyncadd [#allocation3], 0
      %s18 = sshll.u32 %s0, 4
      %s19 = int_to_ptr.hbm [resolvable:$true] %s18
      %s20 = sshll.u32 [#allocation2], 4
      %s21 = int_to_ptr.vmem [resolvable:$true] %s20
      %26 = dma.hbm_to_vmem [thread:$0]  %s19, 256, %s21, [#allocation3], 128, 128, 8
    $region5: #{tpu_custom_call.1} parent=1 // pred_fallthru
      _
    // Predicated region
    $region6: #{tpu_custom_call.1} parent=1 // pred_check
      _
    $region7: #{tpu_custom_call.1} parent=1 // pred_check_branch
      %28 = sbr.rel (0) target = $region9
    $region8: #{tpu_custom_call.1} parent=1 // pred_region
      %30 = vsyncadd [#allocation6], 0
      %s31 = sshll.u32 %s1, 4
      %s32 = int_to_ptr.hbm [resolvable:$true] %s31
      %s33 = sshll.u32 [#allocation5], 4
      %s34 = int_to_ptr.vmem [resolvable:$true] %s33
      %39 = dma.hbm_to_vmem [thread:$0]  %s32, 512, %s34, [#allocation6], 128, 128, 8
    $region9: #{tpu_custom_call.1} parent=1 // pred_fallthru
      _
    // Predicated region
    $region10: #{tpu_custom_call.1} parent=1 // pred_check
      _
    $region11: #{tpu_custom_call.1} parent=1 // pred_check_branch
      %41 = sbr.rel (0) target = $region13
    $region12: #{tpu_custom_call.1} parent=1 // pred_region
      %43 = vsyncadd [#allocation6], 0
      %s44 = sshll.u32 %s2, 4
      %s45 = int_to_ptr.hbm [resolvable:$true] %s44
      %s46 = sshll.u32 [#allocation7], 4
      %s47 = int_to_ptr.vmem [resolvable:$true] %s46
      %52 = dma.hbm_to_vmem [thread:$0]  %s45, 512, %s47, [#allocation6], 128, 128, 8
    $region13: #{tpu_custom_call.1} parent=1 // pred_fallthru
      _
    // Predicated region
    $region14: #{tpu_custom_call.1} parent=1 // pred_check
      _
    $region15: #{tpu_custom_call.1} parent=1 // pred_check_branch
      %54 = sbr.rel (0) target = $region17
    $region16: #{tpu_custom_call.1} parent=1 // pred_region
      %56 = vsyncadd [#allocation9], 0
      %s57 = sshll.u32 %s3, 4
      %s58 = int_to_ptr.hbm [resolvable:$true] %s57
      %s59 = sshll.u32 [#allocation8], 4
      %s60 = int_to_ptr.vmem [resolvable:$true] %s59
      %65 = dma.hbm_to_vmem [thread:$0]  %s58, 6144, %s60, [#allocation9], 128, 128, 8
    $region17: #{tpu_custom_call.1} parent=1 // pred_fallthru
      _
    // Predicated region
    $region18: #{tpu_custom_call.1} parent=1 // pred_check
      _
    $region19: #{tpu_custom_call.1} parent=1 // pred_check_branch
      %67 = sbr.rel (0) target = $region21
    $region20: #{tpu_custom_call.1} parent=1 // pred_region
      %69 = vsyncadd [#allocation9], 0
      %s71 = sshll.u32 %s4, 4
      %s72 = int_to_ptr.hbm [resolvable:$true] %s71
      %s73 = sshll.u32 [#allocation10], 4
      %s74 = int_to_ptr.vmem [resolvable:$true] %s73
      %76 = dma.hbm_to_vmem [thread:$0]  %s72, 64, %s74, [#allocation9]
    $region21: #{tpu_custom_call.1} parent=1 // pred_fallthru
      _
    // Predicated region
    $region22: #{tpu_custom_call.1} parent=1 // pred_check
      _
    $region23: #{tpu_custom_call.1} parent=1 // pred_check_branch
      %78 = sbr.rel (0) target = $region25
    $region24: #{tpu_custom_call.1} parent=1 // pred_region
      %80 = dma.done [#allocation3], 256
    $region25: #{tpu_custom_call.1} parent=1 // pred_fallthru
      _
    // Predicated region
    $region26: #{tpu_custom_call.1} parent=1 // pred_check
      _
    $region27: #{tpu_custom_call.1} parent=1 // pred_check_branch
      %82 = sbr.rel (0) target = $region29
    $region28: #{tpu_custom_call.1} parent=1 // pred_region
      %84 = dma.done [#allocation6], 512
    $region29: #{tpu_custom_call.1} parent=1 // pred_fallthru
      _
    // Predicated region
    $region30: #{tpu_custom_call.1} parent=1 // pred_check
      _
    $region31: #{tpu_custom_call.1} parent=1 // pred_check_branch
      %86 = sbr.rel (0) target = $region33
    $region32: #{tpu_custom_call.1} parent=1 // pred_region
      %88 = dma.done [#allocation6], 512
    $region33: #{tpu_custom_call.1} parent=1 // pred_fallthru
      _
    // Predicated region
    $region34: #{tpu_custom_call.1} parent=1 // pred_check
      _
    $region35: #{tpu_custom_call.1} parent=1 // pred_check_branch
      %90 = sbr.rel (0) target = $region37
    $region36: #{tpu_custom_call.1} parent=1 // pred_region
      %92 = dma.done [#allocation9], 6144
    $region37: #{tpu_custom_call.1} parent=1 // pred_fallthru
      _
    // Predicated region
    $region38: #{tpu_custom_call.1} parent=1 // pred_check
      _
    $region39: #{tpu_custom_call.1} parent=1 // pred_check_branch
      %94 = sbr.rel (0) target = $region41
    $region40: #{tpu_custom_call.1} parent=1 // pred_region
      %96 = dma.done [#allocation9], 64
    $region41: #{tpu_custom_call.1} parent=1 // pred_fallthru
      _
    %v98 = vld [vmem:[#allocation2] sm:$0xff]
    %v99 = vld [vmem:[#allocation2 + $0x8] sm:$0xff]
    %v100 = vpack.c.bf16 %v98, %v98
    %v101 = vpack.c.bf16 %v99, %v99
    %v102 = vld [vmem:[#allocation5] sm:$0xff]
    %v103 = vld [vmem:[#allocation5 + $0x8] sm:$0xff]
    %v104 = vld [vmem:[#allocation5 + $0x10] sm:$0xff]
    %v105 = vld [vmem:[#allocation5 + $0x18] sm:$0xff]
    %v106 = vpack.c.bf16 %v102, %v102
    %v107 = vpack.c.bf16 %v103, %v103
    %v108 = vpack.c.bf16 %v104, %v104
    %v109 = vpack.c.bf16 %v105, %v105
    %v110 = vld [vmem:[#allocation7] sm:$0xff]
    %v111 = vld [vmem:[#allocation7 + $0x8] sm:$0xff]
    %v112 = vld [vmem:[#allocation7 + $0x10] sm:$0xff]
    %v113 = vld [vmem:[#allocation7 + $0x18] sm:$0xff]
    %v114 = vpack.c.bf16 %v110, %v110
    %v115 = vpack.c.bf16 %v111, %v111
    %v116 = vpack.c.bf16 %v112, %v112
    %v117 = vpack.c.bf16 %v113, %v113
    %v118 = vld [vmem:[#allocation8] sm:$0xff]
    %v119 = vld [vmem:[#allocation8 + $0x8] sm:$0xff]
    %v120 = vld [vmem:[#allocation8 + $0x10] sm:$0xff]
    %v121 = vld [vmem:[#allocation8 + $0x18] sm:$0xff]
    %v122 = vld [vmem:[#allocation8 + $0x20] sm:$0xff]
    %v123 = vld [vmem:[#allocation8 + $0x28] sm:$0xff]
    %v124 = vld [vmem:[#allocation8 + $0x30] sm:$0xff]
    %v125 = vld [vmem:[#allocation8 + $0x38] sm:$0xff]
    %v126 = vld [vmem:[#allocation8 + $0x40] sm:$0xff]
    %v127 = vld [vmem:[#allocation8 + $0x48] sm:$0xff]
    %v128 = vld [vmem:[#allocation8 + $0x50] sm:$0xff]
    %v129 = vld [vmem:[#allocation8 + $0x58] sm:$0xff]
    %v130 = vld [vmem:[#allocation8 + $0x60] sm:$0xff]
    %v131 = vld [vmem:[#allocation8 + $0x68] sm:$0xff]
    %v132 = vld [vmem:[#allocation8 + $0x70] sm:$0xff]
    %v133 = vld [vmem:[#allocation8 + $0x78] sm:$0xff]
    %v134 = vld [vmem:[#allocation8 + $0x80] sm:$0xff]
    %v135 = vld [vmem:[#allocation8 + $0x88] sm:$0xff]
    %v136 = vld [vmem:[#allocation8 + $0x90] sm:$0xff]
    %v137 = vld [vmem:[#allocation8 + $0x98] sm:$0xff]
    %v138 = vld [vmem:[#allocation8 + $0xa0] sm:$0xff]
    %v139 = vld [vmem:[#allocation8 + $0xa8] sm:$0xff]
    %v140 = vld [vmem:[#allocation8 + $0xb0] sm:$0xff]
    %v141 = vld [vmem:[#allocation8 + $0xb8] sm:$0xff]
    %v142 = vld [vmem:[#allocation8 + $0xc0] sm:$0xff]
    %v143 = vld [vmem:[#allocation8 + $0xc8] sm:$0xff]
    %v144 = vld [vmem:[#allocation8 + $0xd0] sm:$0xff]
    %v145 = vld [vmem:[#allocation8 + $0xd8] sm:$0xff]
    %v146 = vld [vmem:[#allocation8 + $0xe0] sm:$0xff]
    %v147 = vld [vmem:[#allocation8 + $0xe8] sm:$0xff]
    %v148 = vld [vmem:[#allocation8 + $0xf0] sm:$0xff]
    %v149 = vld [vmem:[#allocation8 + $0xf8] sm:$0xff]
    %v150 = vld [vmem:[#allocation8 + $0x100] sm:$0xff]
    %v151 = vld [vmem:[#allocation8 + $0x108] sm:$0xff]
    %v152 = vld [vmem:[#allocation8 + $0x110] sm:$0xff]
    %v153 = vld [vmem:[#allocation8 + $0x118] sm:$0xff]
    %v154 = vld [vmem:[#allocation8 + $0x120] sm:$0xff]
    %v155 = vld [vmem:[#allocation8 + $0x128] sm:$0xff]
    %v156 = vld [vmem:[#allocation8 + $0x130] sm:$0xff]
    %v157 = vld [vmem:[#allocation8 + $0x138] sm:$0xff]
    %v158 = vld [vmem:[#allocation8 + $0x140] sm:$0xff]
    %v159 = vld [vmem:[#allocation8 + $0x148] sm:$0xff]
    %v160 = vld [vmem:[#allocation8 + $0x150] sm:$0xff]
    %v161 = vld [vmem:[#allocation8 + $0x158] sm:$0xff]
    %v162 = vld [vmem:[#allocation8 + $0x160] sm:$0xff]
    %v163 = vld [vmem:[#allocation8 + $0x168] sm:$0xff]
    %v164 = vld [vmem:[#allocation8 + $0x170] sm:$0xff]
    %v165 = vld [vmem:[#allocation8 + $0x178] sm:$0xff]
    %v166 = vpack.c.bf16 %v118, %v118
    %v167 = vpack.c.bf16 %v119, %v119
    %v168 = vpack.c.bf16 %v120, %v120
    %v169 = vpack.c.bf16 %v121, %v121
    %v170 = vpack.c.bf16 %v122, %v122
    %v171 = vpack.c.bf16 %v123, %v123
    %v172 = vpack.c.bf16 %v124, %v124
    %v173 = vpack.c.bf16 %v125, %v125
    %v174 = vpack.c.bf16 %v126, %v126
    %v175 = vpack.c.bf16 %v127, %v127
    %v176 = vpack.c.bf16 %v128, %v128
    %v177 = vpack.c.bf16 %v129, %v129
    %v178 = vpack.c.bf16 %v130, %v130
    %v179 = vpack.c.bf16 %v131, %v131
    %v180 = vpack.c.bf16 %v132, %v132
    %v181 = vpack.c.bf16 %v133, %v133
    %v182 = vpack.c.bf16 %v134, %v134
    %v183 = vpack.c.bf16 %v135, %v135
    %v184 = vpack.c.bf16 %v136, %v136
    %v185 = vpack.c.bf16 %v137, %v137
    %v186 = vpack.c.bf16 %v138, %v138
    %v187 = vpack.c.bf16 %v139, %v139
    %v188 = vpack.c.bf16 %v140, %v140
    %v189 = vpack.c.bf16 %v141, %v141
    %v190 = vpack.c.bf16 %v142, %v142
    %v191 = vpack.c.bf16 %v143, %v143
    %v192 = vpack.c.bf16 %v144, %v144
    %v193 = vpack.c.bf16 %v145, %v145
    %v194 = vpack.c.bf16 %v146, %v146
    %v195 = vpack.c.bf16 %v147, %v147
    %v196 = vpack.c.bf16 %v148, %v148
    %v197 = vpack.c.bf16 %v149, %v149
    %v198 = vpack.c.bf16 %v150, %v150
    %v199 = vpack.c.bf16 %v151, %v151
    %v200 = vpack.c.bf16 %v152, %v152
    %v201 = vpack.c.bf16 %v153, %v153
    %v202 = vpack.c.bf16 %v154, %v154
    %v203 = vpack.c.bf16 %v155, %v155
    %v204 = vpack.c.bf16 %v156, %v156
    %v205 = vpack.c.bf16 %v157, %v157
    %v206 = vpack.c.bf16 %v158, %v158
    %v207 = vpack.c.bf16 %v159, %v159
    %v208 = vpack.c.bf16 %v160, %v160
    %v209 = vpack.c.bf16 %v161, %v161
    %v210 = vpack.c.bf16 %v162, %v162
    %v211 = vpack.c.bf16 %v163, %v163
    %v212 = vpack.c.bf16 %v164, %v164
    %v213 = vpack.c.bf16 %v165, %v165
    %v214 = vld [vmem:[#allocation10] sm:$0x7]
    %v215 = vperm.slane %v214, 0
    %v218 = vunpack.c.l.b16 %v100
    %v219 = vunpack.c.l.b16 %v101
    %v220 = vpack.c.b16 %v219, %v218
    %v238 = vunpack.c.l.b16 %v166
    %v239 = vunpack.c.l.b16 %v167
    %v240 = vunpack.c.l.b16 %v168
    %v241 = vunpack.c.l.b16 %v169
    %v242 = vunpack.c.l.b16 %v170
    %v243 = vunpack.c.l.b16 %v171
    %v244 = vunpack.c.l.b16 %v172
    %v245 = vunpack.c.l.b16 %v173
    %v246 = vunpack.c.l.b16 %v174
    %v247 = vunpack.c.l.b16 %v175
    %v248 = vunpack.c.l.b16 %v176
    %v249 = vunpack.c.l.b16 %v177
    %v250 = vunpack.c.l.b16 %v178
    %v251 = vunpack.c.l.b16 %v179
    %v252 = vunpack.c.l.b16 %v180
    %v253 = vunpack.c.l.b16 %v181
    %v254 = vpack.c.b16 %v239, %v238
    %v255 = vpack.c.b16 %v241, %v240
    %v256 = vpack.c.b16 %v243, %v242
    %v257 = vpack.c.b16 %v245, %v244
    %v258 = vpack.c.b16 %v247, %v246
    %v259 = vpack.c.b16 %v249, %v248
    %v260 = vpack.c.b16 %v251, %v250
    %v261 = vpack.c.b16 %v253, %v252
    %270 = vmatpush.bf16.xpose.msra.mxu0 %v261
    %271 = vmatpush.bf16.xpose.msra.mxu0 %v260
    %272 = vmatpush.bf16.xpose.msra.mxu0 %v259
    %273 = vmatpush.bf16.xpose.msra.mxu0 %v258
    %274 = vmatpush.bf16.xpose.msra.mxu0 %v257
    %275 = vmatpush.bf16.xpose.msra.mxu0 %v256
    %276 = vmatpush.bf16.xpose.msra.mxu0 %v255
    %277 = vmatpush.bf16.xpose.msra.mxu0 %v254
    %278 = vmatmul.bf16.gmra.mxu0 %v220
    %v279 = vpop.f32.mrf.mxu0
    %v280 = vadd.f32 %v215, %v279
    %v281 = vpop.f32.mrf.mxu0
    %v282 = vadd.f32 %v215, %v281
    %283 = vdwg.mxu0
    %v284 = vperm.slane %v214, 1
    %v289 = vunpack.c.l.b16 %v106
    %v290 = vunpack.c.l.b16 %v107
    %v291 = vunpack.c.l.b16 %v108
    %v292 = vunpack.c.l.b16 %v109
    %v293 = vpack.c.b16 %v290, %v289
    %v294 = vpack.c.b16 %v292, %v291
    %v313 = vunpack.c.l.b16 %v182
    %v314 = vunpack.c.l.b16 %v183
    %v315 = vunpack.c.l.b16 %v184
    %v316 = vunpack.c.l.b16 %v185
    %v317 = vunpack.c.l.b16 %v186
    %v318 = vunpack.c.l.b16 %v187
    %v319 = vunpack.c.l.b16 %v188
    %v320 = vunpack.c.l.b16 %v189
    %v321 = vunpack.c.l.b16 %v190
    %v322 = vunpack.c.l.b16 %v191
    %v323 = vunpack.c.l.b16 %v192
    %v324 = vunpack.c.l.b16 %v193
    %v325 = vunpack.c.l.b16 %v194
    %v326 = vunpack.c.l.b16 %v195
    %v327 = vunpack.c.l.b16 %v196
    %v328 = vunpack.c.l.b16 %v197
    %v329 = vpack.c.b16 %v314, %v313
    %v330 = vpack.c.b16 %v316, %v315
    %v331 = vpack.c.b16 %v318, %v317
    %v332 = vpack.c.b16 %v320, %v319
    %v333 = vpack.c.b16 %v322, %v321
    %v334 = vpack.c.b16 %v324, %v323
    %v335 = vpack.c.b16 %v326, %v325
    %v336 = vpack.c.b16 %v328, %v327
    %345 = vmatpush.bf16.xpose.msra.mxu0 %v336
    %346 = vmatpush.bf16.xpose.msra.mxu0 %v335
    %347 = vmatpush.bf16.xpose.msra.mxu0 %v334
    %348 = vmatpush.bf16.xpose.msra.mxu0 %v333
    %349 = vmatpush.bf16.xpose.msra.mxu0 %v332
    %350 = vmatpush.bf16.xpose.msra.mxu0 %v331
    %351 = vmatpush.bf16.xpose.msra.mxu0 %v330
    %352 = vmatpush.bf16.xpose.msra.mxu0 %v329
    %353 = vmatmul.bf16.gmra.mxu0 %v293
    %v354 = vpop.f32.mrf.mxu0
    %v355 = vadd.f32 %v284, %v354
    %v356 = vpop.f32.mrf.mxu0
    %v357 = vadd.f32 %v284, %v356
    %358 = vmatmul.bf16.gmra.mxu0 %v294
    %v359 = vpop.f32.mrf.mxu0
    %v360 = vadd.f32 %v284, %v359
    %v361 = vpop.f32.mrf.mxu0
    %v362 = vadd.f32 %v284, %v361
    %363 = vdwg.mxu0
    %v364 = vperm.slane %v214, 2
    %v369 = vunpack.c.l.b16 %v114
    %v370 = vunpack.c.l.b16 %v115
    %v371 = vunpack.c.l.b16 %v116
    %v372 = vunpack.c.l.b16 %v117
    %v373 = vpack.c.b16 %v370, %v369
    %v374 = vpack.c.b16 %v372, %v371
    %v393 = vunpack.c.l.b16 %v198
    %v394 = vunpack.c.l.b16 %v199
    %v395 = vunpack.c.l.b16 %v200
    %v396 = vunpack.c.l.b16 %v201
    %v397 = vunpack.c.l.b16 %v202
    %v398 = vunpack.c.l.b16 %v203
    %v399 = vunpack.c.l.b16 %v204
    %v400 = vunpack.c.l.b16 %v205
    %v401 = vunpack.c.l.b16 %v206
    %v402 = vunpack.c.l.b16 %v207
    %v403 = vunpack.c.l.b16 %v208
    %v404 = vunpack.c.l.b16 %v209
    %v405 = vunpack.c.l.b16 %v210
    %v406 = vunpack.c.l.b16 %v211
    %v407 = vunpack.c.l.b16 %v212
    %v408 = vunpack.c.l.b16 %v213
    %v409 = vpack.c.b16 %v394, %v393
    %v410 = vpack.c.b16 %v396, %v395
    %v411 = vpack.c.b16 %v398, %v397
    %v412 = vpack.c.b16 %v400, %v399
    %v413 = vpack.c.b16 %v402, %v401
    %v414 = vpack.c.b16 %v404, %v403
    %v415 = vpack.c.b16 %v406, %v405
    %v416 = vpack.c.b16 %v408, %v407
    %425 = vmatpush.bf16.xpose.msra.mxu0 %v416
    %426 = vmatpush.bf16.xpose.msra.mxu0 %v415
    %427 = vmatpush.bf16.xpose.msra.mxu0 %v414
    %428 = vmatpush.bf16.xpose.msra.mxu0 %v413
    %429 = vmatpush.bf16.xpose.msra.mxu0 %v412
    %430 = vmatpush.bf16.xpose.msra.mxu0 %v411
    %431 = vmatpush.bf16.xpose.msra.mxu0 %v410
    %432 = vmatpush.bf16.xpose.msra.mxu0 %v409
    %433 = vmatmul.bf16.gmra.mxu0 %v373
    %v434 = vpop.f32.mrf.mxu0
    %v435 = vadd.f32 %v364, %v434
    %v436 = vpop.f32.mrf.mxu0
    %v437 = vadd.f32 %v364, %v436
    %438 = vmatmul.bf16.gmra.mxu0 %v374
    %v439 = vpop.f32.mrf.mxu0
    %v440 = vadd.f32 %v364, %v439
    %v441 = vpop.f32.mrf.mxu0
    %v442 = vadd.f32 %v364, %v441
    %443 = vdwg.mxu0
    %v444 = vmul.f32 %v280, 0.088388346
    %v445 = vmul.f32 %v282, 0.088388346
    %v446 = vpack.c.bf16 %v444, %v444
    %v447 = vpack.c.bf16 %v445, %v445
    %v448 = vpack.c.bf16 %v355, %v355
    %v449 = vpack.c.bf16 %v357, %v357
    %v450 = vpack.c.bf16 %v360, %v360
    %v451 = vpack.c.bf16 %v362, %v362
    %v452 = vpack.c.bf16 %v435, %v435
    %v453 = vpack.c.bf16 %v437, %v437
    %v454 = vpack.c.bf16 %v440, %v440
    %v455 = vpack.c.bf16 %v442, %v442
    %v458 = vunpack.c.l.b16 %v446
    %v459 = vunpack.c.l.b16 %v447
    %v460 = vpack.c.b16 %v459, %v458
    %v466 = vunpack.c.l.b16 %v448
    %v467 = vunpack.c.l.b16 %v449
    %v468 = vunpack.c.l.b16 %v450
    %v469 = vunpack.c.l.b16 %v451
    %v470 = vpack.c.b16 %v467, %v466
    %v471 = vpack.c.b16 %v469, %v468
    %474 = vmatpush.bf16.xpose.msra.mxu0 0
    %475 = vmatpush.bf16.xpose.msra.mxu0 0
    %476 = vmatpush.bf16.xpose.msra.mxu0 0
    %477 = vmatpush.bf16.xpose.msra.mxu0 0
    %478 = vmatpush.bf16.xpose.msra.mxu0 0
    %479 = vmatpush.bf16.xpose.msra.mxu0 0
    %480 = vmatpush.bf16.xpose.msra.mxu0 %v471
    %481 = vmatpush.bf16.xpose.msra.mxu0 %v470
    %482 = vmatmul.bf16.gmra.mxu0 %v460
    %v483 = vpop.f32.mrf.mxu0
    %v484 = vadd.f32 0.0, %v483
    %v485 = vpop.f32.mrf.mxu0
    %v486 = vadd.f32 0.0, %v485
    %487 = vdwg.mxu0
    %vm488 = vcmask 261120
    %v489 = vsel %vm488, %v484, -inf
    %490 = vmax.xlane.f32.xlu0 %v489
    %v491 = vpop.xlane.xlu0 %490
    %v492 = vsel %vm488, %v486, -inf
    %493 = vmax.xlane.f32.xlu0 %v492
    %v494 = vpop.xlane.xlu0 %493
    %v495 = vsub.f32 %v484, %v491
    %v496 = vsub.f32 %v486, %v494
    %v497 = vmul.f32 %v495, 1.442695
    %v498 = vpow.pop %v497
    %v499 = vmul.f32 %v496, 1.442695
    %v500 = vpow.pop %v499
    %v501 = vsel %vm488, %v498, 0.0
    %502 = vadd.xlane.f32.xlu0 %v501
    %v503 = vpop.xlane.xlu0 %502
    %v504 = vsel %vm488, %v500, 0.0
    %505 = vadd.xlane.f32.xlu0 %v504
    %v506 = vpop.xlane.xlu0 %505
    %v507 = vrcp.pop %v503
    %v508 = vmul.f32 %v503, %v507
    %v509 = vsub.f32 1.0, %v508
    %v510 = vmul.f32 %v507, %v509
    %v511 = vadd.f32 %v507, %v510
    %vm512 = vweird.f32 %v503
    %vm513 = vweird.f32 %v507
    %vm514 = vmor %vm512, %vm513
    %v515 = vsel %vm514, %v507, %v511
    %v516 = vand.u32 2147483647, %v503
    %vm517 = vcmp.eq.f32.partialorder %v516, 8.507059e+37
    %v518 = vand.u32 %v503, 2147483648
    %v519 = vor.u32 1.1754944e-38, %v518
    %v520 = vsel %vm517, %v519, %v515
    %v521 = vrcp.pop %v506
    %v522 = vmul.f32 %v506, %v521
    %v523 = vsub.f32 1.0, %v522
    %v524 = vmul.f32 %v521, %v523
    %v525 = vadd.f32 %v521, %v524
    %vm526 = vweird.f32 %v506
    %vm527 = vweird.f32 %v521
    %vm528 = vmor %vm526, %vm527
    %v529 = vsel %vm528, %v521, %v525
    %v530 = vand.u32 2147483647, %v506
    %vm531 = vcmp.eq.f32.partialorder %v530, 8.507059e+37
    %v532 = vand.u32 %v506, 2147483648
    %v533 = vor.u32 1.1754944e-38, %v532
    %v534 = vsel %vm531, %v533, %v529
    %v535 = vmul.f32 %v498, %v520
    %v536 = vmul.f32 %v500, %v534
    %v537 = vpack.c.bf16 %v535, %v535
    %v538 = vpack.c.bf16 %v536, %v536
    %v541 = vunpack.c.l.b16 %v537
    %v542 = vunpack.c.l.b16 %v538
    %v543 = vpack.c.b16 %v542, %v541
    %v548 = vunpack.c.l.b16 %v452
    %v549 = vunpack.c.l.b16 %v453
    %v550 = vunpack.c.l.b16 %v454
    %v551 = vunpack.c.l.b16 %v455
    %v552 = vpack.c.b16 %v549, %v548
    %v553 = vpack.c.b16 %v551, %v550
    %v557 = vsel %vm488, %v543, 0
    %559 = vmatpush.bf16.msra.mxu0 0
    %560 = vmatpush.bf16.msra.mxu0 0
    %561 = vmatpush.bf16.msra.mxu0 0
    %562 = vmatpush.bf16.msra.mxu0 0
    %563 = vmatpush.bf16.msra.mxu0 0
    %564 = vmatpush.bf16.msra.mxu0 0
    %565 = vmatpush.bf16.msra.mxu0 %v553
    %566 = vmatpush.bf16.msra.mxu0 %v552
    %567 = vmatmul.bf16.gmra.mxu0 %v557
    %v568 = vpop.f32.mrf.mxu0
    %v569 = vadd.f32 0.0, %v568
    %v570 = vpop.f32.mrf.mxu0
    %v571 = vadd.f32 0.0, %v570
    %572 = vdwg.mxu0
    %573 = vst [vmem:[#allocation11] sm:$0xff] %v569
    %574 = vst [vmem:[#allocation11 + $0x8] sm:$0xff] %v571
    // Predicated region
    $region42: #{tpu_custom_call.1} parent=1 // pred_check
      _
    $region43: #{tpu_custom_call.1} parent=1 // pred_check_branch
      %576 = sbr.rel (0) target = $region45
    $region44: #{tpu_custom_call.1} parent=1 // pred_region
      %578 = vsyncadd [#allocation4], 0
      %s579 = sshll.u32 [#allocation11], 4
      %s580 = int_to_ptr.vmem [resolvable:$true] %s579
      %s581 = sshll.u32 %s5, 4
      %s582 = int_to_ptr.hbm [resolvable:$true] %s581
      %587 = dma.vmem_to_hbm [thread:$0]  %s580, 256, %s582, [#allocation4], 128, 128, 8
    $region45: #{tpu_custom_call.1} parent=1 // pred_fallthru
      _
    // Predicated region
    $region46: #{tpu_custom_call.1} parent=1 // pred_check
      _
    $region47: #{tpu_custom_call.1} parent=1 // pred_check_branch
      %589 = sbr.rel (0) target = $region49
    $region48: #{tpu_custom_call.1} parent=1 // pred_region
      %591 = dma.done [#allocation4], 256
    $region49: #{tpu_custom_call.1} parent=1 // pred_fallthru
      _
    %592 = vsyncpa [#allocation3], 1
    %593 = vsyncpa [#allocation6], 1
    %594 = vsyncpa [#allocation9], 1
    %595 = vsyncpa [#allocation4], 1

</llo_original>
